<compile_context>
chip_gen: v7x
topology: tpu7x:2x2x1
jax: 0.10.0
libtpu: 0.0.40
codegen_flags: <defaults>
</compile_context>

<pallas_src>
import functools

import jax
import jax.numpy as jnp
from jax import lax
from jax.experimental import pallas as pl
from jax.experimental.pallas import tpu as pltpu


def _round_up(x, m):
    return ((x + m - 1) // m) * m


def _cdiv(a, b):
    return -(-a // b)


# ----------------------------------------------------------------------------- kernel
def _make_kernel(S, P, Tc, Bt, Hp, OUTp, static_chunk):
    """One grid step = (batch tile, time chunk).  The recurrence over the chunk is an
    in-kernel fori_loop; h/c are carried across chunks in VMEM scratch.  Gate layout is
    [i | f | o | g], each a 128-aligned lane block (padding is zero and provably inert).
    """

    def step(t_local, carry, xg_ref, whh_ref, hs_sc, t0):
        h, c = carry
        # gates(t) = precomputed (x_t @ W_ih^T + b_ih + b_hh)  +  h_{t-1} @ W_hh^T
        gates = xg_ref[t_local].astype(jnp.float32) + jnp.dot(
            h.astype(whh_ref.dtype), whh_ref[...],
            preferred_element_type=jnp.float32)
        sig = jax.nn.sigmoid(gates[:, :3 * Hp])          # i, f, o in one EUP call
        i = sig[:, 0 * Hp:1 * Hp]
        f = sig[:, 1 * Hp:2 * Hp]
        o = sig[:, 2 * Hp:3 * Hp]
        g = jnp.tanh(gates[:, 3 * Hp:4 * Hp])
        c = f * c + i * g
        h = o * jnp.tanh(c)

        t_glob = t0 + t_local

        @pl.when(t_glob >= S - P)                        # stash only the last P states
        def _():
            hs_sc[t_glob - (S - P)] = h

        return h, c

    def kernel(xg_ref, h0_ref, c0_ref, whh_ref, wl_ref, bl_ref,
               pred_ref, hn_ref, cn_ref, hs_sc, h_sc, c_sc):
        tc = pl.program_id(1)
        n_tc = pl.num_programs(1)
        t0 = tc * Tc

        @pl.when(tc == 0)
        def _():
            h_sc[...] = h0_ref[...]
            c_sc[...] = c0_ref[...]

        body = functools.partial(step, xg_ref=xg_ref, whh_ref=whh_ref,
                                 hs_sc=hs_sc, t0=t0)
        carry = (h_sc[...], c_sc[...])

        if static_chunk and Tc % 2 == 0:
            # Manual 2x unroll with a static trip count: LLO scheduling visibility
            # without the vreg-spill blowup of a full unroll.
            def body2(k, cr):
                return body(2 * k + 1, body(2 * k, cr))
            carry = lax.fori_loop(0, Tc // 2, body2, carry)
        elif static_chunk:
            carry = lax.fori_loop(0, Tc, body, carry)
        else:
            # Ragged last chunk: only process the valid timesteps.
            carry = lax.fori_loop(0, jnp.minimum(Tc, S - t0), body, carry)

        h_sc[...], c_sc[...] = carry

        @pl.when(tc == n_tc - 1)
        def _():
            # Final states written exactly once, after the whole sequence.
            hn_ref[...] = h_sc[...].astype(hn_ref.dtype)
            cn_ref[...] = c_sc[...].astype(cn_ref.dtype)
            # Head: ReLU(Linear(h_t)) only for the last P steps (hoisted out of the
            # serial loop), lane-dense OUTp store.
            y = jnp.dot(hs_sc[...].reshape(P * Bt, Hp).astype(wl_ref.dtype),
                        wl_ref[...], preferred_element_type=jnp.float32)
            y = jnp.maximum(y + bl_ref[...], 0.0)
            pred_ref[...] = y.reshape(P, Bt, OUTp).astype(pred_ref.dtype)

    return kernel


# ----------------------------------------------------------------------------- wrapper
def lstm_forward(input_seq, hidden_cell, pred_length, params,
                 mxu_dtype=jnp.bfloat16):
    """Mirrors LSTM.forward(). Returns (predictions[-pred_length:], (h_n, c_n)).

    mxu_dtype: operand/storage dtype of the MXU weights (W_hh^T, W_lin^T) and of the
    precomputed input projection xg.  bfloat16 (default) gives native single-pass MXU
    matmuls on every TPU generation and halves xg's HBM traffic; accumulation and all
    gate/state math stay f32.  NOTE: the bf16 default casts h_{t-1} to bf16 every step,
    so expect ~1e-2-level deviation vs an f32 reference on long sequences; pass
    jnp.float32 for tight numerical agreement (slower, emulated f32 matmuls).
    """
    w_ih, w_hh, b_ih, b_hh, w_lin, b_lin = params
    S, B, IN = input_seq.shape
    H = w_hh.shape[1]
    OUT = w_lin.shape[0]
    P = min(int(pred_length), S)

    f32 = jnp.float32
    # TODO(synk): for 4*H <= 128 the per-gate 128-lane padding inflates the recurrent
    # matmul / EUP work by 128/H; production sizes (H >= 128, module default H=200)
    # are the intended regime.
    Hp = _round_up(H, 128)
    OUTp = _round_up(OUT, 128)

    # Batch tiling: <=128 rows per tile, and >=2 tiles whenever B allows so the
    # "parallel" grid axis can span both v7x TensorCores.
    Bp = _round_up(B, 8)
    n_bt = max(1, _cdiv(Bp, 128))
    if Bp >= 16:
        n_bt = max(n_bt, 2)
    Bt = _round_up(_cdiv(Bp, n_bt), 8)
    Bp = Bt * n_bt

    # Time chunking: bound the double-buffered xg block to ~8 MiB so the HBM->VMEM DMA
    # pipelines against the recurrence and VMEM stays well under 64 MiB (v7x).
    xg_isz = jnp.dtype(mxu_dtype).itemsize
    bytes_per_step = Bt * 4 * Hp * xg_isz
    Tc = int(max(1, min(64, (8 << 20) // max(1, 2 * bytes_per_step))))
    Tc = min(Tc, S)
    for cand in range(Tc, max(0, Tc // 2), -1):   # prefer a static chunk trip count
        if S % cand == 0:
            Tc = cand
            break
    n_tc = _cdiv(S, Tc)
    Sp = n_tc * Tc
    static_chunk = (S % Tc == 0)

    h0 = hidden_cell[0][0]               # (B, H) -- drop num_layers=1 axis
    c0 = hidden_cell[1][0]

    # Reorder PyTorch gates [i, f, g, o] -> [i, f, o, g] so the three sigmoids are one
    # contiguous (Bt, 3*Hp) call in the kernel.
    perm = jnp.array([0, 1, 3, 2])
    w_ih_g = w_ih.reshape(4, H, IN)[perm].reshape(4 * H, IN)
    b_g = (b_ih + b_hh).reshape(4, H)[perm].reshape(4 * H)
    w_hh_g = w_hh.reshape(4, H, H)[perm]                       # (gate, out=H, in=H)

    # Hoisted input projection: ONE (S*B, IN) @ (IN, 4H) matmul + fused biases (XLA).
    xg = input_seq.reshape(S * B, IN).astype(f32) @ w_ih_g.T.astype(f32) + b_g
    xg = xg.reshape(S, B, 4, H)
    xg = jnp.pad(xg, ((0, Sp - S), (0, Bp - B), (0, 0), (0, Hp - H)))  # zero pads inert
    xg = xg.reshape(Sp, Bp, 4 * Hp).astype(mxu_dtype)

    # W_hh^T with per-gate column blocks padded to Hp (128-aligned gate slabs).
    whh_t = jnp.transpose(w_hh_g, (2, 0, 1))                   # (in=H, gate, out=H)
    whh_t = jnp.pad(whh_t, ((0, Hp - H), (0, 0), (0, Hp - H)))
    whh_t = whh_t.reshape(Hp, 4 * Hp).astype(mxu_dtype)

    wl_t = jnp.pad(w_lin.T, ((0, Hp - H), (0, OUTp - OUT))).astype(mxu_dtype)
    bl = jnp.pad(b_lin, ((0, OUTp - OUT),)).reshape(1, OUTp).astype(f32)

    h0p = jnp.pad(h0.astype(f32), ((0, Bp - B), (0, Hp - H)))
    c0p = jnp.pad(c0.astype(f32), ((0, Bp - B), (0, Hp - H)))

    kernel = _make_kernel(S, P, Tc, Bt, Hp, OUTp, static_chunk)

    grid_spec = pltpu.PrefetchScalarGridSpec(
        num_scalar_prefetch=0,
        grid=(n_bt, n_tc),                                 # (parallel batch, serial time)
        in_specs=[
            pl.BlockSpec((Tc, Bt, 4 * Hp), lambda b, t: (t, b, 0)),   # xg time chunk
            pl.BlockSpec((Bt, Hp), lambda b, t: (b, 0)),              # h0 tile
            pl.BlockSpec((Bt, Hp), lambda b, t: (b, 0)),              # c0 tile
            pl.BlockSpec((Hp, 4 * Hp), lambda b, t: (0, 0)),          # W_hh^T (invariant)
            pl.BlockSpec((Hp, OUTp), lambda b, t: (0, 0)),            # W_lin^T (invariant)
            pl.BlockSpec((1, OUTp), lambda b, t: (0, 0)),             # b_lin
        ],
        out_specs=[
            pl.BlockSpec((P, Bt, OUTp), lambda b, t: (0, b, 0)),      # preds (last P)
            pl.BlockSpec((Bt, Hp), lambda b, t: (b, 0)),              # h_n
            pl.BlockSpec((Bt, Hp), lambda b, t: (b, 0)),              # c_n
        ],
        scratch_shapes=[
            pltpu.VMEM((P, Bt, Hp), f32),      # last-P hidden states (head input)
            pltpu.VMEM((Bt, Hp), f32),         # h carry across time chunks
            pltpu.VMEM((Bt, Hp), f32),         # c carry across time chunks
        ],
    )

    # VMEM sizing: double-buffered blocks + scratch, ~25% headroom, capped at 64 MiB.
    vmem_est = (2 * Tc * Bt * 4 * Hp * xg_isz          # xg (double buffered)
                + 8 * Bt * Hp * 4                      # h0, c0, h_n, c_n blocks
                + 2 * Hp * 4 * Hp * xg_isz             # W_hh^T
                + 2 * Hp * OUTp * xg_isz               # W_lin^T
                + 2 * OUTp * 4                         # b_lin
                + 2 * P * Bt * OUTp * 4                # preds block
                + (P + 2) * Bt * Hp * 4)               # scratch
    vmem_limit = int(min(max(vmem_est * 5 // 4 + (2 << 20), 16 << 20), 64 << 20))

    preds_p, hn_p, cn_p = pl.pallas_call(
        kernel,
        out_shape=(
            jax.ShapeDtypeStruct((P, Bp, OUTp), f32),
            jax.ShapeDtypeStruct((Bp, Hp), f32),
            jax.ShapeDtypeStruct((Bp, Hp), f32),
        ),
        grid_spec=grid_spec,
        compiler_params=pltpu.CompilerParams(
            dimension_semantics=("parallel", "arbitrary"),
            vmem_limit_bytes=vmem_limit),
    )(xg, h0p, c0p, whh_t, wl_t, bl)

    # Un-pad and match PyTorch shapes: preds (P, B, OUT); hidden_cell (1, B, H).
    preds = preds_p[:, :B, :OUT]
    h_n = hn_p[:B, :H][None]
    c_n = cn_p[:B, :H][None]
    return preds, (h_n, c_n)


# TODO(synk): `sample()` (nn.RNN decoder loop) is not part of forward() and is not implemented.


# ----------------------------------------------------------------------------- reference
def lstm_forward_ref(input_seq, hidden_cell, pred_length, params):
    w_ih, w_hh, b_ih, b_hh, w_lin, b_lin = params
    h0 = hidden_cell[0][0]
    c0 = hidden_cell[1][0]

    def step(carry, x_t):
        h, c = carry
        gates = x_t @ w_ih.T + b_ih + h @ w_hh.T + b_hh
        i, f, g, o = jnp.split(gates, 4, axis=-1)
        i, f, o = jax.nn.sigmoid(i), jax.nn.sigmoid(f), jax.nn.sigmoid(o)
        g = jnp.tanh(g)
        c = f * c + i * g
        h = o * jnp.tanh(c)
        return (h, c), h

    (h_n, c_n), hs = jax.lax.scan(step, (h0, c0), input_seq)
    preds = jax.nn.relu(hs @ w_lin.T + b_lin)
    return preds[-pred_length:], (h_n[None], c_n[None])


# ----------------------------------------------------------------------------- main
if __name__ == "__main__":
    # Small shapes consistent with the module's forward:
    SEQ, BATCH, IN, HIDDEN, OUT = 8, 2, 1, 32, 1
    PRED_LEN = 4

    key = jax.random.PRNGKey(0)
    ks = jax.random.split(key, 9)
    bound = 1.0 / jnp.sqrt(HIDDEN)

    w_ih = jax.random.uniform(ks[0], (4 * HIDDEN, IN), jnp.float32, -bound, bound)
    w_hh = jax.random.uniform(ks[1], (4 * HIDDEN, HIDDEN), jnp.float32, -bound, bound)
    b_ih = jax.random.uniform(ks[2], (4 * HIDDEN,), jnp.float32, -bound, bound)
    b_hh = jax.random.uniform(ks[3], (4 * HIDDEN,), jnp.float32, -bound, bound)
    w_lin = jax.random.uniform(ks[4], (OUT, HIDDEN), jnp.float32, -bound, bound)
    b_lin = jax.random.uniform(ks[5], (OUT,), jnp.float32, -bound, bound)
    params = (w_ih, w_hh, b_ih, b_hh, w_lin, b_lin)

    input_seq = jax.random.normal(ks[6], (SEQ, BATCH, IN), jnp.float32)
    h0 = jax.random.normal(ks[7], (1, BATCH, HIDDEN), jnp.float32) * 0.1
    c0 = jax.random.normal(ks[8], (1, BATCH, HIDDEN), jnp.float32) * 0.1
    hidden_cell = (h0, c0)

    preds_ref, (h_ref, c_ref) = lstm_forward_ref(input_seq, hidden_cell, PRED_LEN, params)

    # 1) logic check: f32 MXU operands, tight tolerance vs the f32 reference.
    preds32, (h32, c32) = jax.jit(
        lambda x, hc: lstm_forward(x, hc, PRED_LEN, params, mxu_dtype=jnp.float32)
    )(input_seq, hidden_cell)
    jax.block_until_ready((preds32, h32, c32))
    assert preds32.shape == (PRED_LEN, BATCH, OUT)
    assert h32.shape == (1, BATCH, HIDDEN) and c32.shape == (1, BATCH, HIDDEN)
    assert jnp.allclose(preds32, preds_ref, atol=1e-5, rtol=1e-5)
    assert jnp.allclose(h32, h_ref, atol=1e-5, rtol=1e-5)
    assert jnp.allclose(c32, c_ref, atol=1e-5, rtol=1e-5)

    # 2) default fast path: bf16 MXU operands (f32 accumulation / gate math), loose tol.
    preds, (h_n, c_n) = jax.jit(
        lambda x, hc: lstm_forward(x, hc, PRED_LEN, params)
    )(input_seq, hidden_cell)
    jax.block_until_ready((preds, h_n, c_n))
    assert preds.shape == (PRED_LEN, BATCH, OUT)
    assert jnp.allclose(preds, preds_ref, atol=5e-2, rtol=5e-2)
    assert jnp.allclose(h_n, h_ref, atol=5e-2, rtol=5e-2)
    assert jnp.allclose(c_n, c_ref, atol=5e-2, rtol=5e-2)

    print("KERNEL_OK")
</pallas_src>

<mosaic_0001>
module attributes {stable_mosaic.version = 11 : i64} {
  func.func @kernel(%arg0: i32, %arg1: i32, %arg2: memref<8x8x512xf32, #tpu.memory_space<vmem>>, %arg3: memref<8x128xf32, #tpu.memory_space<vmem>>, %arg4: memref<8x128xf32, #tpu.memory_space<vmem>>, %arg5: memref<128x512xf32, #tpu.memory_space<vmem>>, %arg6: memref<128x128xf32, #tpu.memory_space<vmem>>, %arg7: memref<1x128xf32, #tpu.memory_space<vmem>>, %arg8: memref<4x8x128xf32, #tpu.memory_space<vmem>>, %arg9: memref<8x128xf32, #tpu.memory_space<vmem>>, %arg10: memref<8x128xf32, #tpu.memory_space<vmem>>, %arg11: memref<4x8x128xf32, #tpu.memory_space<vmem>>, %arg12: memref<8x128xf32, #tpu.memory_space<vmem>>, %arg13: memref<8x128xf32, #tpu.memory_space<vmem>>) attributes {dimension_semantics = [#tpu.dimension_semantics<parallel>, #tpu.dimension_semantics<arbitrary>], iteration_bounds = array<i64: 1, 1>, scalar_prefetch = 0 : i64, scratch_operands = 3 : i64, tpu.core_type = #tpu.core_type<tc>, window_params = [{transform_indices = @transform_0, window_bounds = array<i64: 8, 8, 512>}, {transform_indices = @transform_1, window_bounds = array<i64: 8, 128>}, {transform_indices = @transform_2, window_bounds = array<i64: 8, 128>}, {pipeline_mode = #tpu.pipeline_mode<synchronous>, transform_indices = @transform_3, window_bounds = array<i64: 128, 512>}, {pipeline_mode = #tpu.pipeline_mode<synchronous>, transform_indices = @transform_4, window_bounds = array<i64: 128, 128>}, {pipeline_mode = #tpu.pipeline_mode<synchronous>, transform_indices = @transform_5, window_bounds = array<i64: 1, 128>}, {transform_indices = @transform_6, window_bounds = array<i64: 4, 8, 128>}, {transform_indices = @transform_7, window_bounds = array<i64: 8, 128>}, {transform_indices = @transform_8, window_bounds = array<i64: 8, 128>}]} {
    %c8_i32 = arith.constant 8 : i32
    %0 = arith.muli %arg1, %c8_i32 : i32
    %c0_i32 = arith.constant 0 : i32
    %1 = arith.cmpi eq, %arg1, %c0_i32 : i32
    %2 = arith.extui %1 : i1 to i32
    %c0_i32_0 = arith.constant 0 : i32
    %3 = arith.cmpi ne, %2, %c0_i32_0 : i32
    scf.if %3 {
      %c0_12 = arith.constant 0 : index
      %c0_13 = arith.constant 0 : index
      %13 = vector.load %arg3[%c0_12, %c0_13] : memref<8x128xf32, #tpu.memory_space<vmem>>, vector<8x128xf32>
      %c0_14 = arith.constant 0 : index
      %c0_15 = arith.constant 0 : index
      %14 = vector.load %arg12[%c0_14, %c0_15] : memref<8x128xf32, #tpu.memory_space<vmem>>, vector<8x128xf32>
      tpu.vector_store %arg12[%c0_14, %c0_15], %13 {strides = array<i32>} : memref<8x128xf32, #tpu.memory_space<vmem>>, vector<8x128xf32>,
      %c0_16 = arith.constant 0 : index
      %c0_17 = arith.constant 0 : index
      %15 = vector.load %arg4[%c0_16, %c0_17] : memref<8x128xf32, #tpu.memory_space<vmem>>, vector<8x128xf32>
      %c0_18 = arith.constant 0 : index
      %c0_19 = arith.constant 0 : index
      %16 = vector.load %arg13[%c0_18, %c0_19] : memref<8x128xf32, #tpu.memory_space<vmem>>, vector<8x128xf32>
      tpu.vector_store %arg13[%c0_18, %c0_19], %15 {strides = array<i32>} : memref<8x128xf32, #tpu.memory_space<vmem>>, vector<8x128xf32>,
    } else {
    }
    %c0 = arith.constant 0 : index
    %c0_1 = arith.constant 0 : index
    %4 = vector.load %arg12[%c0, %c0_1] : memref<8x128xf32, #tpu.memory_space<vmem>>, vector<8x128xf32>
    %c0_2 = arith.constant 0 : index
    %c0_3 = arith.constant 0 : index
    %5 = vector.load %arg13[%c0_2, %c0_3] : memref<8x128xf32, #tpu.memory_space<vmem>>, vector<8x128xf32>
    %c0_i32_4 = arith.constant 0 : i32
    %c4_i32 = arith.constant 4 : i32
    %6 = arith.addi %c0_i32_4, %c4_i32 : i32
    %c1_i32 = arith.constant 1 : i32
    %7:2 = scf.for %arg14 = %c0_i32_4 to %6 step %c1_i32 iter_args(%arg15 = %4, %arg16 = %5) -> (vector<8x128xf32>, vector<8x128xf32>)  : i32 {
      %c2_i32 = arith.constant 2 : i32
      %13 = arith.muli %c2_i32, %arg14 : i32
      %c1_i32_12 = arith.constant 1 : i32
      %14 = arith.addi %13, %c1_i32_12 : i32
      %c2_i32_13 = arith.constant 2 : i32
      %15 = arith.muli %c2_i32_13, %arg14 : i32
      %16 = arith.index_cast %15 : i32 to index
      %c0_14 = arith.constant 0 : index
      %c0_15 = arith.constant 0 : index
      %17 = vector.load %arg2[%16, %c0_14, %c0_15] : memref<8x8x512xf32, #tpu.memory_space<vmem>>, vector<1x8x512xf32>
      %18 = vector.shape_cast %17 : vector<1x8x512xf32> to vector<8x512xf32>
      %c0_16 = arith.constant 0 : index
      %c0_17 = arith.constant 0 : index
      %19 = vector.load %arg5[%c0_16, %c0_17] : memref<128x512xf32, #tpu.memory_space<vmem>>, vector<128x512xf32>
      %cst = arith.constant dense<0.000000e+00> : vector<8x512xf32>
      %20 = tpu.matmul %arg15, %19, %cst {dimension_numbers = #tpu.dot_dimension_numbers<[1], [0], [0], [1], [0, 0, 1, 1], [], []>} : vector<8x128xf32>, vector<128x512xf32>, vector<8x512xf32> -> vector<8x512xf32>
      %21 = arith.addf %18, %20 : vector<8x512xf32>
      %22 = vector.extract_strided_slice %21 {offsets = [0, 0], sizes = [8, 384], strides = [1, 1]} : vector<8x512xf32> to vector<8x384xf32>
      %23 = arith.negf %22 : vector<8x384xf32>
      %24 = math.exp %23 : vector<8x384xf32>
      %cst_18 = arith.constant 1.000000e+00 : f32
      %25 = vector.broadcast %cst_18 : f32 to vector<8x384xf32>
      %26 = arith.addf %25, %24 : vector<8x384xf32>
      %27 = arith.divf %25, %26 : vector<8x384xf32>
      %28 = vector.extract_strided_slice %27 {offsets = [0, 0], sizes = [8, 128], strides = [1, 1]} : vector<8x384xf32> to vector<8x128xf32>
      %29 = vector.extract_strided_slice %27 {offsets = [0, 128], sizes = [8, 128], strides = [1, 1]} : vector<8x384xf32> to vector<8x128xf32>
      %30 = vector.extract_strided_slice %27 {offsets = [0, 256], sizes = [8, 128], strides = [1, 1]} : vector<8x384xf32> to vector<8x128xf32>
      %31 = vector.extract_strided_slice %21 {offsets = [0, 384], sizes = [8, 128], strides = [1, 1]} : vector<8x512xf32> to vector<8x128xf32>
      %32 = math.tanh %31 : vector<8x128xf32>
      %33 = arith.mulf %29, %arg16 : vector<8x128xf32>
      %34 = arith.mulf %28, %32 : vector<8x128xf32>
      %35 = arith.addf %33, %34 : vector<8x128xf32>
      %36 = math.tanh %35 : vector<8x128xf32>
      %37 = arith.mulf %30, %36 : vector<8x128xf32>
      %38 = arith.addi %0, %15 : i32
      %c4_i32_19 = arith.constant 4 : i32
      %39 = arith.cmpi sge, %38, %c4_i32_19 : i32
      %40 = arith.extui %39 : i1 to i32
      %c0_i32_20 = arith.constant 0 : i32
      %41 = arith.cmpi ne, %40, %c0_i32_20 : i32
      scf.if %41 {
        %c4_i32_29 = arith.constant 4 : i32
        %68 = arith.subi %38, %c4_i32_29 : i32
        %69 = arith.index_cast %68 : i32 to index
        %c0_30 = arith.constant 0 : index
        %c0_31 = arith.constant 0 : index
        %70 = vector.load %arg11[%69, %c0_30, %c0_31] : memref<4x8x128xf32, #tpu.memory_space<vmem>>, vector<1x8x128xf32>
        %71 = vector.shape_cast %70 : vector<1x8x128xf32> to vector<8x128xf32>
        %72 = vector.shape_cast %37 : vector<8x128xf32> to vector<1x8x128xf32>
        tpu.vector_store %arg11[%69, %c0_30, %c0_31], %72 {strides = array<i32>} : memref<4x8x128xf32, #tpu.memory_space<vmem>>, vector<1x8x128xf32>,
      } else {
      }
      %42 = arith.index_cast %14 : i32 to index
      %c0_21 = arith.constant 0 : index
      %c0_22 = arith.constant 0 : index
      %43 = vector.load %arg2[%42, %c0_21, %c0_22] : memref<8x8x512xf32, #tpu.memory_space<vmem>>, vector<1x8x512xf32>
      %44 = vector.shape_cast %43 : vector<1x8x512xf32> to vector<8x512xf32>
      %c0_23 = arith.constant 0 : index
      %c0_24 = arith.constant 0 : index
      %45 = vector.load %arg5[%c0_23, %c0_24] : memref<128x512xf32, #tpu.memory_space<vmem>>, vector<128x512xf32>
      %cst_25 = arith.constant dense<0.000000e+00> : vector<8x512xf32>
      %46 = tpu.matmul %37, %45, %cst_25 {dimension_numbers = #tpu.dot_dimension_numbers<[1], [0], [0], [1], [0, 0, 1, 1], [], []>} : vector<8x128xf32>, vector<128x512xf32>, vector<8x512xf32> -> vector<8x512xf32>
      %47 = arith.addf %44, %46 : vector<8x512xf32>
      %48 = vector.extract_strided_slice %47 {offsets = [0, 0], sizes = [8, 384], strides = [1, 1]} : vector<8x512xf32> to vector<8x384xf32>
      %49 = arith.negf %48 : vector<8x384xf32>
      %50 = math.exp %49 : vector<8x384xf32>
      %cst_26 = arith.constant 1.000000e+00 : f32
      %51 = vector.broadcast %cst_26 : f32 to vector<8x384xf32>
      %52 = arith.addf %51, %50 : vector<8x384xf32>
      %53 = arith.divf %51, %52 : vector<8x384xf32>
      %54 = vector.extract_strided_slice %53 {offsets = [0, 0], sizes = [8, 128], strides = [1, 1]} : vector<8x384xf32> to vector<8x128xf32>
      %55 = vector.extract_strided_slice %53 {offsets = [0, 128], sizes = [8, 128], strides = [1, 1]} : vector<8x384xf32> to vector<8x128xf32>
      %56 = vector.extract_strided_slice %53 {offsets = [0, 256], sizes = [8, 128], strides = [1, 1]} : vector<8x384xf32> to vector<8x128xf32>
      %57 = vector.extract_strided_slice %47 {offsets = [0, 384], sizes = [8, 128], strides = [1, 1]} : vector<8x512xf32> to vector<8x128xf32>
      %58 = math.tanh %57 : vector<8x128xf32>
      %59 = arith.mulf %55, %35 : vector<8x128xf32>
      %60 = arith.mulf %54, %58 : vector<8x128xf32>
      %61 = arith.addf %59, %60 : vector<8x128xf32>
      %62 = math.tanh %61 : vector<8x128xf32>
      %63 = arith.mulf %56, %62 : vector<8x128xf32>
      %64 = arith.addi %0, %14 : i32
      %c4_i32_27 = arith.constant 4 : i32
      %65 = arith.cmpi sge, %64, %c4_i32_27 : i32
      %66 = arith.extui %65 : i1 to i32
      %c0_i32_28 = arith.constant 0 : i32
      %67 = arith.cmpi ne, %66, %c0_i32_28 : i32
      scf.if %67 {
        %c4_i32_29 = arith.constant 4 : i32
        %68 = arith.subi %64, %c4_i32_29 : i32
        %69 = arith.index_cast %68 : i32 to index
        %c0_30 = arith.constant 0 : index
        %c0_31 = arith.constant 0 : index
        %70 = vector.load %arg11[%69, %c0_30, %c0_31] : memref<4x8x128xf32, #tpu.memory_space<vmem>>, vector<1x8x128xf32>
        %71 = vector.shape_cast %70 : vector<1x8x128xf32> to vector<8x128xf32>
        %72 = vector.shape_cast %63 : vector<8x128xf32> to vector<1x8x128xf32>
        tpu.vector_store %arg11[%69, %c0_30, %c0_31], %72 {strides = array<i32>} : memref<4x8x128xf32, #tpu.memory_space<vmem>>, vector<1x8x128xf32>,
      } else {
      }
      scf.yield %63, %61 : vector<8x128xf32>, vector<8x128xf32>
    }
    %c4_i32_5 = arith.constant 4 : i32
    %c0_6 = arith.constant 0 : index
    %c0_7 = arith.constant 0 : index
    %8 = vector.load %arg12[%c0_6, %c0_7] : memref<8x128xf32, #tpu.memory_space<vmem>>, vector<8x128xf32>
    tpu.vector_store %arg12[%c0_6, %c0_7], %7#0 {strides = array<i32>} : memref<8x128xf32, #tpu.memory_space<vmem>>, vector<8x128xf32>,
    %c0_8 = arith.constant 0 : index
    %c0_9 = arith.constant 0 : index
    %9 = vector.load %arg13[%c0_8, %c0_9] : memref<8x128xf32, #tpu.memory_space<vmem>>, vector<8x128xf32>
    tpu.vector_store %arg13[%c0_8, %c0_9], %7#1 {strides = array<i32>} : memref<8x128xf32, #tpu.memory_space<vmem>>, vector<8x128xf32>,
    %c0_i32_10 = arith.constant 0 : i32
    %10 = arith.cmpi eq, %arg1, %c0_i32_10 : i32
    %11 = arith.extui %10 : i1 to i32
    %c0_i32_11 = arith.constant 0 : i32
    %12 = arith.cmpi ne, %11, %c0_i32_11 : i32
    scf.if %12 {
      %c0_12 = arith.constant 0 : index
      %c0_13 = arith.constant 0 : index
      %13 = vector.load %arg12[%c0_12, %c0_13] : memref<8x128xf32, #tpu.memory_space<vmem>>, vector<8x128xf32>
      %c0_14 = arith.constant 0 : index
      %c0_15 = arith.constant 0 : index
      %14 = vector.load %arg9[%c0_14, %c0_15] : memref<8x128xf32, #tpu.memory_space<vmem>>, vector<8x128xf32>
      tpu.vector_store %arg9[%c0_14, %c0_15], %13 {strides = array<i32>} : memref<8x128xf32, #tpu.memory_space<vmem>>, vector<8x128xf32>,
      %c0_16 = arith.constant 0 : index
      %c0_17 = arith.constant 0 : index
      %15 = vector.load %arg13[%c0_16, %c0_17] : memref<8x128xf32, #tpu.memory_space<vmem>>, vector<8x128xf32>
      %c0_18 = arith.constant 0 : index
      %c0_19 = arith.constant 0 : index
      %16 = vector.load %arg10[%c0_18, %c0_19] : memref<8x128xf32, #tpu.memory_space<vmem>>, vector<8x128xf32>
      tpu.vector_store %arg10[%c0_18, %c0_19], %15 {strides = array<i32>} : memref<8x128xf32, #tpu.memory_space<vmem>>, vector<8x128xf32>,
      %c0_20 = arith.constant 0 : index
      %c0_21 = arith.constant 0 : index
      %c0_22 = arith.constant 0 : index
      %17 = vector.load %arg11[%c0_20, %c0_21, %c0_22] : memref<4x8x128xf32, #tpu.memory_space<vmem>>, vector<4x8x128xf32>
      %18 = vector.shape_cast %17 : vector<4x8x128xf32> to vector<32x128xf32>
      %c0_23 = arith.constant 0 : index
      %c0_24 = arith.constant 0 : index
      %19 = vector.load %arg6[%c0_23, %c0_24] : memref<128x128xf32, #tpu.memory_space<vmem>>, vector<128x128xf32>
      %cst = arith.constant dense<0.000000e+00> : vector<32x128xf32>
      %20 = tpu.matmul %18, %19, %cst {dimension_numbers = #tpu.dot_dimension_numbers<[1], [0], [0], [1], [0, 0, 1, 1], [], []>} : vector<32x128xf32>, vector<128x128xf32>, vector<32x128xf32> -> vector<32x128xf32>
      %c0_25 = arith.constant 0 : index
      %c0_26 = arith.constant 0 : index
      %21 = vector.load %arg7[%c0_25, %c0_26] : memref<1x128xf32, #tpu.memory_space<vmem>>, vector<1x128xf32>
      %22 = vector.broadcast %21 : vector<1x128xf32> to vector<32x128xf32>
      %23 = arith.addf %20, %22 : vector<32x128xf32>
      %cst_27 = arith.constant 0.000000e+00 : f32
      %24 = vector.broadcast %cst_27 : f32 to vector<32x128xf32>
      %25 = arith.maximumf %23, %24 : vector<32x128xf32>
      %26 = vector.shape_cast %25 : vector<32x128xf32> to vector<4x8x128xf32>
      %c0_28 = arith.constant 0 : index
      %c0_29 = arith.constant 0 : index
      %c0_30 = arith.constant 0 : index
      %27 = vector.load %arg8[%c0_28, %c0_29, %c0_30] : memref<4x8x128xf32, #tpu.memory_space<vmem>>, vector<4x8x128xf32>
      tpu.vector_store %arg8[%c0_28, %c0_29, %c0_30], %26 {strides = array<i32>} : memref<4x8x128xf32, #tpu.memory_space<vmem>>, vector<4x8x128xf32>,
    } else {
    }
    return
  }
  func.func @transform_0(%arg0: i32, %arg1: i32) -> (i32, i32, i32) {
    %c0_i32 = arith.constant 0 : i32
    %c0_i32_0 = arith.constant 0 : i32
    return %arg1, %arg0, %c0_i32 : i32, i32, i32
  }
  func.func @transform_1(%arg0: i32, %arg1: i32) -> (i32, i32) {
    %c0_i32 = arith.constant 0 : i32
    %c0_i32_0 = arith.constant 0 : i32
    return %arg0, %c0_i32 : i32, i32
  }
  func.func @transform_2(%arg0: i32, %arg1: i32) -> (i32, i32) {
    %c0_i32 = arith.constant 0 : i32
    %c0_i32_0 = arith.constant 0 : i32
    return %arg0, %c0_i32 : i32, i32
  }
  func.func @transform_3(%arg0: i32, %arg1: i32) -> (i32, i32) {
    %c0_i32 = arith.constant 0 : i32
    %c0_i32_0 = arith.constant 0 : i32
    %c0_i32_1 = arith.constant 0 : i32
    return %c0_i32, %c0_i32_0 : i32, i32
  }
  func.func @transform_4(%arg0: i32, %arg1: i32) -> (i32, i32) {
    %c0_i32 = arith.constant 0 : i32
    %c0_i32_0 = arith.constant 0 : i32
    %c0_i32_1 = arith.constant 0 : i32
    return %c0_i32, %c0_i32_0 : i32, i32
  }
  func.func @transform_5(%arg0: i32, %arg1: i32) -> (i32, i32) {
    %c0_i32 = arith.constant 0 : i32
    %c0_i32_0 = arith.constant 0 : i32
    %c0_i32_1 = arith.constant 0 : i32
    return %c0_i32, %c0_i32_0 : i32, i32
  }
  func.func @transform_6(%arg0: i32, %arg1: i32) -> (i32, i32, i32) {
    %c0_i32 = arith.constant 0 : i32
    %c0_i32_0 = arith.constant 0 : i32
    %c0_i32_1 = arith.constant 0 : i32
    return %c0_i32, %arg0, %c0_i32_0 : i32, i32, i32
  }
  func.func @transform_7(%arg0: i32, %arg1: i32) -> (i32, i32) {
    %c0_i32 = arith.constant 0 : i32
    %c0_i32_0 = arith.constant 0 : i32
    return %arg0, %c0_i32 : i32, i32
  }
  func.func @transform_8(%arg0: i32, %arg1: i32) -> (i32, i32) {
    %c0_i32 = arith.constant 0 : i32
    %c0_i32_0 = arith.constant 0 : i32
    return %arg0, %c0_i32 : i32, i32
  }
}

</mosaic_0001>

<llo_original>
// kernel: _lambda_.1
$region0: #{_lambda_.1}
  #allocation0 [shape = 'u32[]', space=smem, size = 0x4, offset = 0x4, fixed_abs, tag = 'smem constant byte address 0x4 - core index']
  #allocation1 [shape = 'u32[144,128]{1,0:T(1,128)}', space=vmem, size = 0x12000, scoped, tag = 'internal scratch']
  #allocation2 [shape = 'f32[4,8,128]{2,1,0:T(8,128)}', space=vmem, size = 0x4000, scoped, tag = 'scratch operand']
  #allocation3 [shape = 'f32[8,128]{1,0:T(8,128)}', space=vmem, size = 0x1000, scoped, tag = 'scratch operand']
  #allocation4 [shape = 'f32[8,128]{1,0:T(8,128)}', space=vmem, size = 0x1000, scoped, tag = 'scratch operand']
  %s0 = inlined_call_operand.vmem [shape: f32[8,8,512], index: 0, kind: input, shape index: {}]
  %s1 = inlined_call_operand.vmem [shape: f32[8,128], index: 1, kind: input, shape index: {}]
  %s2 = inlined_call_operand.vmem [shape: f32[8,128], index: 2, kind: input, shape index: {}]
  %s3 = inlined_call_operand.vmem [shape: f32[128,512], index: 3, kind: input, shape index: {}]
  %s4 = inlined_call_operand.vmem [shape: f32[128,128], index: 4, kind: input, shape index: {}]
  %s5 = inlined_call_operand.vmem [shape: f32[1,128], index: 5, kind: input, shape index: {}]
  %s6 = inlined_call_operand.vmem [shape: f32[4,8,128], index: 6, kind: output, shape index: {0}]
  %s7 = inlined_call_operand.vmem [shape: f32[8,128], index: 7, kind: output, shape index: {1}]
  %s8 = inlined_call_operand.vmem [shape: f32[8,128], index: 8, kind: output, shape index: {2}]
  %9 = xla_tuple %s6, %s7, %s8
  %s10 = sld [smem:[#allocation0]]
  $region73: #{_lambda_.1} parent=0
    _
  %s12 = ssub.s32 1, %s10
  %s13 = scalar_select 0, %s12, %s10
  // Predicated region
  $region2: #{_lambda_.1} parent=0 // pred_check
    _
  $region3: #{_lambda_.1} parent=0 // pred_check_branch
    %15 = sbr.rel (0) target = $region5
  $region4: #{_lambda_.1} parent=0 // pred_region
    _
  $region5: #{_lambda_.1} parent=0 // pred_fallthru
    _
  // Predicated region
  $region6: #{_lambda_.1} parent=0 // pred_check
    _
  $region7: #{_lambda_.1} parent=0 // pred_check_branch
    %17 = sbr.rel (0) target = $region9
  $region8: #{_lambda_.1} parent=0 // pred_region
    _
  $region9: #{_lambda_.1} parent=0 // pred_fallthru
    _
  // Predicated region
  $region10: #{_lambda_.1} parent=0 // pred_check
    _
  $region11: #{_lambda_.1} parent=0 // pred_check_branch
    %19 = sbr.rel (0) target = $region13
  $region12: #{_lambda_.1} parent=0 // pred_region
    _
  $region13: #{_lambda_.1} parent=0 // pred_fallthru
    _
  // Predicated region
  $region14: #{_lambda_.1} parent=0 // pred_check
    _
  $region15: #{_lambda_.1} parent=0 // pred_check_branch
    %21 = sbr.rel (0) target = $region17
  $region16: #{_lambda_.1} parent=0 // pred_region
    _
  $region17: #{_lambda_.1} parent=0 // pred_fallthru
    _
  // Predicated region
  $region18: #{_lambda_.1} parent=0 // pred_check
    _
  $region19: #{_lambda_.1} parent=0 // pred_check_branch
    %23 = sbr.rel (0) target = $region21
  $region20: #{_lambda_.1} parent=0 // pred_region
    _
  $region21: #{_lambda_.1} parent=0 // pred_fallthru
    _
  // Predicated region
  $region22: #{_lambda_.1} parent=0 // pred_check
    _
  $region23: #{_lambda_.1} parent=0 // pred_check_branch
    %25 = sbr.rel (0) target = $region25
  $region24: #{_lambda_.1} parent=0 // pred_region
    _
  $region25: #{_lambda_.1} parent=0 // pred_fallthru
    _
  %s26 = smul.u32 0, 8
  %p27 = scmp.eq.s32.totalorder 0, 0
  // Predicated region
  $region26: #{_lambda_.1} parent=0 // pred_check
    %p28 = pneg %p27
  $region27: #{_lambda_.1} parent=0 // pred_check_branch
    %30 = sbr.rel (%p28) target = $region29
  $region28: #{_lambda_.1} parent=0 // pred_region
    %v31 = vld [vmem:[%s1] sm:$0xff]
    %32 = vst [vmem:[#allocation3] sm:$0xff] %v31
    %v33 = vld [vmem:[%s2] sm:$0xff]
    %34 = vst [vmem:[#allocation4] sm:$0xff] %v33
  $region29: #{_lambda_.1} parent=0 // pred_fallthru
    _
  %v35 = vld [vmem:[#allocation3] sm:$0xff]
  %v36 = vld [vmem:[#allocation4] sm:$0xff]
  loop: start=0, step=1, limit=4
  $region30: #{_lambda_.1} parent=0 // loop_pre_header
    _
  $region31: #{_lambda_.1} parent=0 // loop_header
    %s38 = sphi 0, %s42
    %p39 = scmp.ge.s32.totalorder %s38, 4
    %v43 = vphi %v35, %v537
    %v44 = vphi %v36, %v535
  $region32: #{_lambda_.1} parent=0 // loop_header_branch
    %41 = sbr.rel (%p39) target = $region36
  $region33: #{_lambda_.1} parent=0 // loop_body
    %s45 = smul.u32 %s38, 2
    %s46 = sadd.s32 %s45, 1
    %s47 = smul.u32 %s45, 4
    %s48 = smul.addr %s47, 8
    %s49 = scalar_lea.vmem %s0, %s48
    %v50 = vld [vmem:[%s49] sm:$0xff]
    %v51 = vld [vmem:[%s49 + $0x8] sm:$0xff]
    %v52 = vld [vmem:[%s49 + $0x10] sm:$0xff]
    %v53 = vld [vmem:[%s49 + $0x18] sm:$0xff]
    %v54 = vld [vmem:[%s3] sm:$0xff]
    %v55 = vld [vmem:[%s3 + $0x8] sm:$0xff]
    %v56 = vld [vmem:[%s3 + $0x10] sm:$0xff]
    %v57 = vld [vmem:[%s3 + $0x18] sm:$0xff]
    %v58 = vld [vmem:[%s3 + $0x20] sm:$0xff]
    %v59 = vld [vmem:[%s3 + $0x28] sm:$0xff]
    %v60 = vld [vmem:[%s3 + $0x30] sm:$0xff]
    %v61 = vld [vmem:[%s3 + $0x38] sm:$0xff]
    %v62 = vld [vmem:[%s3 + $0x40] sm:$0xff]
    %v63 = vld [vmem:[%s3 + $0x48] sm:$0xff]
    %v64 = vld [vmem:[%s3 + $0x50] sm:$0xff]
    %v65 = vld [vmem:[%s3 + $0x58] sm:$0xff]
    %v66 = vld [vmem:[%s3 + $0x60] sm:$0xff]
    %v67 = vld [vmem:[%s3 + $0x68] sm:$0xff]
    %v68 = vld [vmem:[%s3 + $0x70] sm:$0xff]
    %v69 = vld [vmem:[%s3 + $0x78] sm:$0xff]
    %v70 = vld [vmem:[%s3 + $0x80] sm:$0xff]
    %v71 = vld [vmem:[%s3 + $0x88] sm:$0xff]
    %v72 = vld [vmem:[%s3 + $0x90] sm:$0xff]
    %v73 = vld [vmem:[%s3 + $0x98] sm:$0xff]
    %v74 = vld [vmem:[%s3 + $0xa0] sm:$0xff]
    %v75 = vld [vmem:[%s3 + $0xa8] sm:$0xff]
    %v76 = vld [vmem:[%s3 + $0xb0] sm:$0xff]
    %v77 = vld [vmem:[%s3 + $0xb8] sm:$0xff]
    %v78 = vld [vmem:[%s3 + $0xc0] sm:$0xff]
    %v79 = vld [vmem:[%s3 + $0xc8] sm:$0xff]
    %v80 = vld [vmem:[%s3 + $0xd0] sm:$0xff]
    %v81 = vld [vmem:[%s3 + $0xd8] sm:$0xff]
    %v82 = vld [vmem:[%s3 + $0xe0] sm:$0xff]
    %v83 = vld [vmem:[%s3 + $0xe8] sm:$0xff]
    %v84 = vld [vmem:[%s3 + $0xf0] sm:$0xff]
    %v85 = vld [vmem:[%s3 + $0xf8] sm:$0xff]
    %v86 = vld [vmem:[%s3 + $0x100] sm:$0xff]
    %v87 = vld [vmem:[%s3 + $0x108] sm:$0xff]
    %v88 = vld [vmem:[%s3 + $0x110] sm:$0xff]
    %v89 = vld [vmem:[%s3 + $0x118] sm:$0xff]
    %v90 = vld [vmem:[%s3 + $0x120] sm:$0xff]
    %v91 = vld [vmem:[%s3 + $0x128] sm:$0xff]
    %v92 = vld [vmem:[%s3 + $0x130] sm:$0xff]
    %v93 = vld [vmem:[%s3 + $0x138] sm:$0xff]
    %v94 = vld [vmem:[%s3 + $0x140] sm:$0xff]
    %v95 = vld [vmem:[%s3 + $0x148] sm:$0xff]
    %v96 = vld [vmem:[%s3 + $0x150] sm:$0xff]
    %v97 = vld [vmem:[%s3 + $0x158] sm:$0xff]
    %v98 = vld [vmem:[%s3 + $0x160] sm:$0xff]
    %v99 = vld [vmem:[%s3 + $0x168] sm:$0xff]
    %v100 = vld [vmem:[%s3 + $0x170] sm:$0xff]
    %v101 = vld [vmem:[%s3 + $0x178] sm:$0xff]
    %v102 = vld [vmem:[%s3 + $0x180] sm:$0xff]
    %v103 = vld [vmem:[%s3 + $0x188] sm:$0xff]
    %v104 = vld [vmem:[%s3 + $0x190] sm:$0xff]
    %v105 = vld [vmem:[%s3 + $0x198] sm:$0xff]
    %v106 = vld [vmem:[%s3 + $0x1a0] sm:$0xff]
    %v107 = vld [vmem:[%s3 + $0x1a8] sm:$0xff]
    %v108 = vld [vmem:[%s3 + $0x1b0] sm:$0xff]
    %v109 = vld [vmem:[%s3 + $0x1b8] sm:$0xff]
    %v110 = vld [vmem:[%s3 + $0x1c0] sm:$0xff]
    %v111 = vld [vmem:[%s3 + $0x1c8] sm:$0xff]
    %v112 = vld [vmem:[%s3 + $0x1d0] sm:$0xff]
    %v113 = vld [vmem:[%s3 + $0x1d8] sm:$0xff]
    %v114 = vld [vmem:[%s3 + $0x1e0] sm:$0xff]
    %v115 = vld [vmem:[%s3 + $0x1e8] sm:$0xff]
    %v116 = vld [vmem:[%s3 + $0x1f0] sm:$0xff]
    %v117 = vld [vmem:[%s3 + $0x1f8] sm:$0xff]
    %118 = vmatprep.subr.mxu0 %v55
    %119 = vmatpush1.msra.mxu0 %v54
    %120 = vmatprep.subr.mxu0 %v59
    %121 = vmatpush1.msra.mxu0 %v58
    %122 = vmatprep.subr.mxu0 %v63
    %123 = vmatpush1.msra.mxu0 %v62
    %124 = vmatprep.subr.mxu0 %v67
    %125 = vmatpush1.msra.mxu0 %v66
    %126 = vmatprep.subr.mxu0 %v71
    %127 = vmatpush1.msra.mxu0 %v70
    %128 = vmatprep.subr.mxu0 %v75
    %129 = vmatpush1.msra.mxu0 %v74
    %130 = vmatprep.subr.mxu0 %v79
    %131 = vmatpush1.msra.mxu0 %v78
    %132 = vmatprep.subr.mxu0 %v83
    %133 = vmatpush1.msra.mxu0 %v82
    %134 = vmatprep.subr.mxu0 %v87
    %135 = vmatpush1.msra.mxu0 %v86
    %136 = vmatprep.subr.mxu0 %v91
    %137 = vmatpush1.msra.mxu0 %v90
    %138 = vmatprep.subr.mxu0 %v95
    %139 = vmatpush1.msra.mxu0 %v94
    %140 = vmatprep.subr.mxu0 %v99
    %141 = vmatpush1.msra.mxu0 %v98
    %142 = vmatprep.subr.mxu0 %v103
    %143 = vmatpush1.msra.mxu0 %v102
    %144 = vmatprep.subr.mxu0 %v107
    %145 = vmatpush1.msra.mxu0 %v106
    %146 = vmatprep.subr.mxu0 %v111
    %147 = vmatpush1.msra.mxu0 %v110
    %148 = vmatprep.subr.mxu0 %v115
    %149 = vmatpush1.msra.mxu0 %v114
    %150 = vmatprep.subr.mxu0 0.0
    %151 = vmatpush1.msra.mxu0 0.0
    %152 = vmatprep.subr.mxu0 0.0
    %153 = vmatpush1.msra.mxu0 0.0
    %154 = vmatprep.subr.mxu0 0.0
    %155 = vmatpush1.msra.mxu0 0.0
    %156 = vmatprep.subr.mxu0 0.0
    %157 = vmatpush1.msra.mxu0 0.0
    %158 = vmatprep.subr.mxu0 0.0
    %159 = vmatpush1.msra.mxu0 0.0
    %160 = vmatprep.subr.mxu0 0.0
    %161 = vmatpush1.msra.mxu0 0.0
    %162 = vmatprep.subr.mxu0 0.0
    %163 = vmatpush1.msra.mxu0 0.0
    %164 = vmatprep.subr.mxu0 0.0
    %165 = vmatpush1.msra.mxu0 0.0
    %166 = vmatprep.subr.mxu0 0.0
    %167 = vmatpush1.msra.mxu0 0.0
    %168 = vmatprep.subr.mxu0 0.0
    %169 = vmatpush1.msra.mxu0 0.0
    %170 = vmatprep.subr.mxu0 0.0
    %171 = vmatpush1.msra.mxu0 0.0
    %172 = vmatprep.subr.mxu0 0.0
    %173 = vmatpush1.msra.mxu0 0.0
    %174 = vmatprep.subr.mxu0 0.0
    %175 = vmatpush1.msra.mxu0 0.0
    %176 = vmatprep.subr.mxu0 0.0
    %177 = vmatpush1.msra.mxu0 0.0
    %178 = vmatprep.subr.mxu0 0.0
    %179 = vmatpush1.msra.mxu0 0.0
    %180 = vmatprep.subr.mxu0 0.0
    %181 = vmatpush1.msra.mxu0 0.0
    %182 = vmatprep.mubr.f32.mxu0 0.0
    %183 = vmatmul.mubr.f32.gmra.mrb[0].mxu0 %v43
    %v184 = vpop.f32.mrb[0].mxu0
    %v185 = vadd.f32 0.0, %v184
    %v186 = vpop.f32.mrb[0].mxu0
    %v187 = vadd.f32 0.0, %v186
    %188 = vdwg.mxu0
    %189 = vmatprep.subr.mxu0 %v57
    %190 = vmatpush1.msra.mxu0 %v56
    %191 = vmatprep.subr.mxu0 %v61
    %192 = vmatpush1.msra.mxu0 %v60
    %193 = vmatprep.subr.mxu0 %v65
    %194 = vmatpush1.msra.mxu0 %v64
    %195 = vmatprep.subr.mxu0 %v69
    %196 = vmatpush1.msra.mxu0 %v68
    %197 = vmatprep.subr.mxu0 %v73
    %198 = vmatpush1.msra.mxu0 %v72
    %199 = vmatprep.subr.mxu0 %v77
    %200 = vmatpush1.msra.mxu0 %v76
    %201 = vmatprep.subr.mxu0 %v81
    %202 = vmatpush1.msra.mxu0 %v80
    %203 = vmatprep.subr.mxu0 %v85
    %204 = vmatpush1.msra.mxu0 %v84
    %205 = vmatprep.subr.mxu0 %v89
    %206 = vmatpush1.msra.mxu0 %v88
    %207 = vmatprep.subr.mxu0 %v93
    %208 = vmatpush1.msra.mxu0 %v92
    %209 = vmatprep.subr.mxu0 %v97
    %210 = vmatpush1.msra.mxu0 %v96
    %211 = vmatprep.subr.mxu0 %v101
    %212 = vmatpush1.msra.mxu0 %v100
    %213 = vmatprep.subr.mxu0 %v105
    %214 = vmatpush1.msra.mxu0 %v104
    %215 = vmatprep.subr.mxu0 %v109
    %216 = vmatpush1.msra.mxu0 %v108
    %217 = vmatprep.subr.mxu0 %v113
    %218 = vmatpush1.msra.mxu0 %v112
    %219 = vmatprep.subr.mxu0 %v117
    %220 = vmatpush1.msra.mxu0 %v116
    %221 = vmatprep.subr.mxu0 0.0
    %222 = vmatpush1.msra.mxu0 0.0
    %223 = vmatprep.subr.mxu0 0.0
    %224 = vmatpush1.msra.mxu0 0.0
    %225 = vmatprep.subr.mxu0 0.0
    %226 = vmatpush1.msra.mxu0 0.0
    %227 = vmatprep.subr.mxu0 0.0
    %228 = vmatpush1.msra.mxu0 0.0
    %229 = vmatprep.subr.mxu0 0.0
    %230 = vmatpush1.msra.mxu0 0.0
    %231 = vmatprep.subr.mxu0 0.0
    %232 = vmatpush1.msra.mxu0 0.0
    %233 = vmatprep.subr.mxu0 0.0
    %234 = vmatpush1.msra.mxu0 0.0
    %235 = vmatprep.subr.mxu0 0.0
    %236 = vmatpush1.msra.mxu0 0.0
    %237 = vmatprep.subr.mxu0 0.0
    %238 = vmatpush1.msra.mxu0 0.0
    %239 = vmatprep.subr.mxu0 0.0
    %240 = vmatpush1.msra.mxu0 0.0
    %241 = vmatprep.subr.mxu0 0.0
    %242 = vmatpush1.msra.mxu0 0.0
    %243 = vmatprep.subr.mxu0 0.0
    %244 = vmatpush1.msra.mxu0 0.0
    %245 = vmatprep.subr.mxu0 0.0
    %246 = vmatpush1.msra.mxu0 0.0
    %247 = vmatprep.subr.mxu0 0.0
    %248 = vmatpush1.msra.mxu0 0.0
    %249 = vmatprep.subr.mxu0 0.0
    %250 = vmatpush1.msra.mxu0 0.0
    %251 = vmatprep.subr.mxu0 0.0
    %252 = vmatpush1.msra.mxu0 0.0
    %253 = vmatprep.mubr.f32.mxu0 0.0
    %254 = vmatmul.mubr.f32.gmra.mrb[0].mxu0 %v43
    %v255 = vpop.f32.mrb[0].mxu0
    %v256 = vadd.f32 0.0, %v255
    %v257 = vpop.f32.mrb[0].mxu0
    %v258 = vadd.f32 0.0, %v257
    %259 = vdwg.mxu0
    %v260 = vadd.f32 %v50, %v185
    %v261 = vadd.f32 %v51, %v187
    %v262 = vadd.f32 %v52, %v256
    %v263 = vadd.f32 %v53, %v258
    %v264 = vxor.u32 %v260, 2147483648
    %v265 = vxor.u32 %v261, 2147483648
    %v266 = vxor.u32 %v262, 2147483648
    %v267 = vmul.f32 %v264, 1.442695
    %v268 = vpow.pop %v267
    %v269 = vmul.f32 %v265, 1.442695
    %v270 = vpow.pop %v269
    %v271 = vmul.f32 %v266, 1.442695
    %v272 = vpow.pop %v271
    %v273 = vadd.f32 %v268, 1.0
    %v274 = vadd.f32 %v270, 1.0
    %v275 = vadd.f32 %v272, 1.0
    %v276 = vrcp.pop %v273
    %v277 = vmul.f32 1.0, %v276
    %v278 = vrcp.pop %v274
    %v279 = vmul.f32 1.0, %v278
    %v280 = vrcp.pop %v275
    %v281 = vmul.f32 1.0, %v280
    %v282 = vtanh.pop %v263
    %v283 = vmul.f32 %v279, %v44
    %v284 = vmul.f32 %v277, %v282
    %v285 = vadd.f32 %v283, %v284
    %v286 = vtanh.pop %v285
    %v287 = vmul.f32 %v281, %v286
    %s288 = sadd.s32 %s26, %s45
    %p289 = scmp.ge.s32.totalorder %s288, 4
    // Predicated region
    $region37: #{_lambda_.1} parent=33 // pred_check
      %p290 = pneg %p289
    $region38: #{_lambda_.1} parent=33 // pred_check_branch
      %292 = sbr.rel (%p290) target = $region40
    $region39: #{_lambda_.1} parent=33 // pred_region
      %s293 = ssub.s32 %s288, 4
      %s294 = smul.u32 %s293, 8
      %s295 = scalar_lea.vmem [#allocation2], %s294
      %296 = vst [vmem:[%s295] sm:$0xff] %v287
    $region40: #{_lambda_.1} parent=33 // pred_fallthru
      _
    %s297 = smul.u32 %s46, 4
    %s298 = smul.addr %s297, 8
    %s299 = scalar_lea.vmem %s0, %s298
    %v300 = vld [vmem:[%s299] sm:$0xff]
    %v301 = vld [vmem:[%s299 + $0x8] sm:$0xff]
    %v302 = vld [vmem:[%s299 + $0x10] sm:$0xff]
    %v303 = vld [vmem:[%s299 + $0x18] sm:$0xff]
    %v304 = vld [vmem:[%s3] sm:$0xff]
    %v305 = vld [vmem:[%s3 + $0x8] sm:$0xff]
    %v306 = vld [vmem:[%s3 + $0x10] sm:$0xff]
    %v307 = vld [vmem:[%s3 + $0x18] sm:$0xff]
    %v308 = vld [vmem:[%s3 + $0x20] sm:$0xff]
    %v309 = vld [vmem:[%s3 + $0x28] sm:$0xff]
    %v310 = vld [vmem:[%s3 + $0x30] sm:$0xff]
    %v311 = vld [vmem:[%s3 + $0x38] sm:$0xff]
    %v312 = vld [vmem:[%s3 + $0x40] sm:$0xff]
    %v313 = vld [vmem:[%s3 + $0x48] sm:$0xff]
    %v314 = vld [vmem:[%s3 + $0x50] sm:$0xff]
    %v315 = vld [vmem:[%s3 + $0x58] sm:$0xff]
    %v316 = vld [vmem:[%s3 + $0x60] sm:$0xff]
    %v317 = vld [vmem:[%s3 + $0x68] sm:$0xff]
    %v318 = vld [vmem:[%s3 + $0x70] sm:$0xff]
    %v319 = vld [vmem:[%s3 + $0x78] sm:$0xff]
    %v320 = vld [vmem:[%s3 + $0x80] sm:$0xff]
    %v321 = vld [vmem:[%s3 + $0x88] sm:$0xff]
    %v322 = vld [vmem:[%s3 + $0x90] sm:$0xff]
    %v323 = vld [vmem:[%s3 + $0x98] sm:$0xff]
    %v324 = vld [vmem:[%s3 + $0xa0] sm:$0xff]
    %v325 = vld [vmem:[%s3 + $0xa8] sm:$0xff]
    %v326 = vld [vmem:[%s3 + $0xb0] sm:$0xff]
    %v327 = vld [vmem:[%s3 + $0xb8] sm:$0xff]
    %v328 = vld [vmem:[%s3 + $0xc0] sm:$0xff]
    %v329 = vld [vmem:[%s3 + $0xc8] sm:$0xff]
    %v330 = vld [vmem:[%s3 + $0xd0] sm:$0xff]
    %v331 = vld [vmem:[%s3 + $0xd8] sm:$0xff]
    %v332 = vld [vmem:[%s3 + $0xe0] sm:$0xff]
    %v333 = vld [vmem:[%s3 + $0xe8] sm:$0xff]
    %v334 = vld [vmem:[%s3 + $0xf0] sm:$0xff]
    %v335 = vld [vmem:[%s3 + $0xf8] sm:$0xff]
    %v336 = vld [vmem:[%s3 + $0x100] sm:$0xff]
    %v337 = vld [vmem:[%s3 + $0x108] sm:$0xff]
    %v338 = vld [vmem:[%s3 + $0x110] sm:$0xff]
    %v339 = vld [vmem:[%s3 + $0x118] sm:$0xff]
    %v340 = vld [vmem:[%s3 + $0x120] sm:$0xff]
    %v341 = vld [vmem:[%s3 + $0x128] sm:$0xff]
    %v342 = vld [vmem:[%s3 + $0x130] sm:$0xff]
    %v343 = vld [vmem:[%s3 + $0x138] sm:$0xff]
    %v344 = vld [vmem:[%s3 + $0x140] sm:$0xff]
    %v345 = vld [vmem:[%s3 + $0x148] sm:$0xff]
    %v346 = vld [vmem:[%s3 + $0x150] sm:$0xff]
    %v347 = vld [vmem:[%s3 + $0x158] sm:$0xff]
    %v348 = vld [vmem:[%s3 + $0x160] sm:$0xff]
    %v349 = vld [vmem:[%s3 + $0x168] sm:$0xff]
    %v350 = vld [vmem:[%s3 + $0x170] sm:$0xff]
    %v351 = vld [vmem:[%s3 + $0x178] sm:$0xff]
    %v352 = vld [vmem:[%s3 + $0x180] sm:$0xff]
    %v353 = vld [vmem:[%s3 + $0x188] sm:$0xff]
    %v354 = vld [vmem:[%s3 + $0x190] sm:$0xff]
    %v355 = vld [vmem:[%s3 + $0x198] sm:$0xff]
    %v356 = vld [vmem:[%s3 + $0x1a0] sm:$0xff]
    %v357 = vld [vmem:[%s3 + $0x1a8] sm:$0xff]
    %v358 = vld [vmem:[%s3 + $0x1b0] sm:$0xff]
    %v359 = vld [vmem:[%s3 + $0x1b8] sm:$0xff]
    %v360 = vld [vmem:[%s3 + $0x1c0] sm:$0xff]
    %v361 = vld [vmem:[%s3 + $0x1c8] sm:$0xff]
    %v362 = vld [vmem:[%s3 + $0x1d0] sm:$0xff]
    %v363 = vld [vmem:[%s3 + $0x1d8] sm:$0xff]
    %v364 = vld [vmem:[%s3 + $0x1e0] sm:$0xff]
    %v365 = vld [vmem:[%s3 + $0x1e8] sm:$0xff]
    %v366 = vld [vmem:[%s3 + $0x1f0] sm:$0xff]
    %v367 = vld [vmem:[%s3 + $0x1f8] sm:$0xff]
    %368 = vmatprep.subr.mxu0 %v305
    %369 = vmatpush1.msra.mxu0 %v304
    %370 = vmatprep.subr.mxu0 %v309
    %371 = vmatpush1.msra.mxu0 %v308
    %372 = vmatprep.subr.mxu0 %v313
    %373 = vmatpush1.msra.mxu0 %v312
    %374 = vmatprep.subr.mxu0 %v317
    %375 = vmatpush1.msra.mxu0 %v316
    %376 = vmatprep.subr.mxu0 %v321
    %377 = vmatpush1.msra.mxu0 %v320
    %378 = vmatprep.subr.mxu0 %v325
    %379 = vmatpush1.msra.mxu0 %v324
    %380 = vmatprep.subr.mxu0 %v329
    %381 = vmatpush1.msra.mxu0 %v328
    %382 = vmatprep.subr.mxu0 %v333
    %383 = vmatpush1.msra.mxu0 %v332
    %384 = vmatprep.subr.mxu0 %v337
    %385 = vmatpush1.msra.mxu0 %v336
    %386 = vmatprep.subr.mxu0 %v341
    %387 = vmatpush1.msra.mxu0 %v340
    %388 = vmatprep.subr.mxu0 %v345
    %389 = vmatpush1.msra.mxu0 %v344
    %390 = vmatprep.subr.mxu0 %v349
    %391 = vmatpush1.msra.mxu0 %v348
    %392 = vmatprep.subr.mxu0 %v353
    %393 = vmatpush1.msra.mxu0 %v352
    %394 = vmatprep.subr.mxu0 %v357
    %395 = vmatpush1.msra.mxu0 %v356
    %396 = vmatprep.subr.mxu0 %v361
    %397 = vmatpush1.msra.mxu0 %v360
    %398 = vmatprep.subr.mxu0 %v365
    %399 = vmatpush1.msra.mxu0 %v364
    %400 = vmatprep.subr.mxu0 0.0
    %401 = vmatpush1.msra.mxu0 0.0
    %402 = vmatprep.subr.mxu0 0.0
    %403 = vmatpush1.msra.mxu0 0.0
    %404 = vmatprep.subr.mxu0 0.0
    %405 = vmatpush1.msra.mxu0 0.0
    %406 = vmatprep.subr.mxu0 0.0
    %407 = vmatpush1.msra.mxu0 0.0
    %408 = vmatprep.subr.mxu0 0.0
    %409 = vmatpush1.msra.mxu0 0.0
    %410 = vmatprep.subr.mxu0 0.0
    %411 = vmatpush1.msra.mxu0 0.0
    %412 = vmatprep.subr.mxu0 0.0
    %413 = vmatpush1.msra.mxu0 0.0
    %414 = vmatprep.subr.mxu0 0.0
    %415 = vmatpush1.msra.mxu0 0.0
    %416 = vmatprep.subr.mxu0 0.0
    %417 = vmatpush1.msra.mxu0 0.0
    %418 = vmatprep.subr.mxu0 0.0
    %419 = vmatpush1.msra.mxu0 0.0
    %420 = vmatprep.subr.mxu0 0.0
    %421 = vmatpush1.msra.mxu0 0.0
    %422 = vmatprep.subr.mxu0 0.0
    %423 = vmatpush1.msra.mxu0 0.0
    %424 = vmatprep.subr.mxu0 0.0
    %425 = vmatpush1.msra.mxu0 0.0
    %426 = vmatprep.subr.mxu0 0.0
    %427 = vmatpush1.msra.mxu0 0.0
    %428 = vmatprep.subr.mxu0 0.0
    %429 = vmatpush1.msra.mxu0 0.0
    %430 = vmatprep.subr.mxu0 0.0
    %431 = vmatpush1.msra.mxu0 0.0
    %432 = vmatprep.mubr.f32.mxu0 0.0
    %433 = vmatmul.mubr.f32.gmra.mrb[0].mxu0 %v287
    %v434 = vpop.f32.mrb[0].mxu0
    %v435 = vadd.f32 0.0, %v434
    %v436 = vpop.f32.mrb[0].mxu0
    %v437 = vadd.f32 0.0, %v436
    %438 = vdwg.mxu0
    %439 = vmatprep.subr.mxu0 %v307
    %440 = vmatpush1.msra.mxu0 %v306
    %441 = vmatprep.subr.mxu0 %v311
    %442 = vmatpush1.msra.mxu0 %v310
    %443 = vmatprep.subr.mxu0 %v315
    %444 = vmatpush1.msra.mxu0 %v314
    %445 = vmatprep.subr.mxu0 %v319
    %446 = vmatpush1.msra.mxu0 %v318
    %447 = vmatprep.subr.mxu0 %v323
    %448 = vmatpush1.msra.mxu0 %v322
    %449 = vmatprep.subr.mxu0 %v327
    %450 = vmatpush1.msra.mxu0 %v326
    %451 = vmatprep.subr.mxu0 %v331
    %452 = vmatpush1.msra.mxu0 %v330
    %453 = vmatprep.subr.mxu0 %v335
    %454 = vmatpush1.msra.mxu0 %v334
    %455 = vmatprep.subr.mxu0 %v339
    %456 = vmatpush1.msra.mxu0 %v338
    %457 = vmatprep.subr.mxu0 %v343
    %458 = vmatpush1.msra.mxu0 %v342
    %459 = vmatprep.subr.mxu0 %v347
    %460 = vmatpush1.msra.mxu0 %v346
    %461 = vmatprep.subr.mxu0 %v351
    %462 = vmatpush1.msra.mxu0 %v350
    %463 = vmatprep.subr.mxu0 %v355
    %464 = vmatpush1.msra.mxu0 %v354
    %465 = vmatprep.subr.mxu0 %v359
    %466 = vmatpush1.msra.mxu0 %v358
    %467 = vmatprep.subr.mxu0 %v363
    %468 = vmatpush1.msra.mxu0 %v362
    %469 = vmatprep.subr.mxu0 %v367
    %470 = vmatpush1.msra.mxu0 %v366
    %471 = vmatprep.subr.mxu0 0.0
    %472 = vmatpush1.msra.mxu0 0.0
    %473 = vmatprep.subr.mxu0 0.0
    %474 = vmatpush1.msra.mxu0 0.0
    %475 = vmatprep.subr.mxu0 0.0
    %476 = vmatpush1.msra.mxu0 0.0
    %477 = vmatprep.subr.mxu0 0.0
    %478 = vmatpush1.msra.mxu0 0.0
    %479 = vmatprep.subr.mxu0 0.0
    %480 = vmatpush1.msra.mxu0 0.0
    %481 = vmatprep.subr.mxu0 0.0
    %482 = vmatpush1.msra.mxu0 0.0
    %483 = vmatprep.subr.mxu0 0.0
    %484 = vmatpush1.msra.mxu0 0.0
    %485 = vmatprep.subr.mxu0 0.0
    %486 = vmatpush1.msra.mxu0 0.0
    %487 = vmatprep.subr.mxu0 0.0
    %488 = vmatpush1.msra.mxu0 0.0
    %489 = vmatprep.subr.mxu0 0.0
    %490 = vmatpush1.msra.mxu0 0.0
    %491 = vmatprep.subr.mxu0 0.0
    %492 = vmatpush1.msra.mxu0 0.0
    %493 = vmatprep.subr.mxu0 0.0
    %494 = vmatpush1.msra.mxu0 0.0
    %495 = vmatprep.subr.mxu0 0.0
    %496 = vmatpush1.msra.mxu0 0.0
    %497 = vmatprep.subr.mxu0 0.0
    %498 = vmatpush1.msra.mxu0 0.0
    %499 = vmatprep.subr.mxu0 0.0
    %500 = vmatpush1.msra.mxu0 0.0
    %501 = vmatprep.subr.mxu0 0.0
    %502 = vmatpush1.msra.mxu0 0.0
    %503 = vmatprep.mubr.f32.mxu0 0.0
    %504 = vmatmul.mubr.f32.gmra.mrb[0].mxu0 %v287
    %v505 = vpop.f32.mrb[0].mxu0
    %v506 = vadd.f32 0.0, %v505
    %v507 = vpop.f32.mrb[0].mxu0
    %v508 = vadd.f32 0.0, %v507
    %509 = vdwg.mxu0
    %v510 = vadd.f32 %v300, %v435
    %v511 = vadd.f32 %v301, %v437
    %v512 = vadd.f32 %v302, %v506
    %v513 = vadd.f32 %v303, %v508
    %v514 = vxor.u32 %v510, 2147483648
    %v515 = vxor.u32 %v511, 2147483648
    %v516 = vxor.u32 %v512, 2147483648
    %v517 = vmul.f32 %v514, 1.442695
    %v518 = vpow.pop %v517
    %v519 = vmul.f32 %v515, 1.442695
    %v520 = vpow.pop %v519
    %v521 = vmul.f32 %v516, 1.442695
    %v522 = vpow.pop %v521
    %v523 = vadd.f32 %v518, 1.0
    %v524 = vadd.f32 %v520, 1.0
    %v525 = vadd.f32 %v522, 1.0
    %v526 = vrcp.pop %v523
    %v527 = vmul.f32 1.0, %v526
    %v528 = vrcp.pop %v524
    %v529 = vmul.f32 1.0, %v528
    %v530 = vrcp.pop %v525
    %v531 = vmul.f32 1.0, %v530
    %v532 = vtanh.pop %v513
    %v533 = vmul.f32 %v529, %v285
    %v534 = vmul.f32 %v527, %v532
    %v535 = vadd.f32 %v533, %v534
    %v536 = vtanh.pop %v535
    %v537 = vmul.f32 %v531, %v536
    %s538 = sadd.s32 %s26, %s46
    %p539 = scmp.ge.s32.totalorder %s538, 4
    // Predicated region
    $region41: #{_lambda_.1} parent=33 // pred_check
      %p540 = pneg %p539
    $region42: #{_lambda_.1} parent=33 // pred_check_branch
      %542 = sbr.rel (%p540) target = $region44
    $region43: #{_lambda_.1} parent=33 // pred_region
      %s543 = ssub.s32 %s538, 4
      %s544 = smul.u32 %s543, 8
      %s545 = scalar_lea.vmem [#allocation2], %s544
      %546 = vst [vmem:[%s545] sm:$0xff] %v537
    $region44: #{_lambda_.1} parent=33 // pred_fallthru
      _
  $region34: #{_lambda_.1} parent=0 // loop_footer
    %s42 = sadd.s32 1, %s38
  $region35: #{_lambda_.1} parent=0 // loop_footer_branch
    %37 = sbr.rel target = $region31
  $region36: #{_lambda_.1} parent=0 // loop_exit
    _
  %547 = vst [vmem:[#allocation3] sm:$0xff] %v43
  %548 = vst [vmem:[#allocation4] sm:$0xff] %v44
  // Predicated region
  $region45: #{_lambda_.1} parent=0 // pred_check
    %p549 = pneg %p27
  $region46: #{_lambda_.1} parent=0 // pred_check_branch
    %551 = sbr.rel (%p549) target = $region48
  $region47: #{_lambda_.1} parent=0 // pred_region
    %v552 = vld [vmem:[#allocation3] sm:$0xff]
    %553 = vst [vmem:[%s7] sm:$0xff] %v552
    %v554 = vld [vmem:[#allocation4] sm:$0xff]
    %555 = vst [vmem:[%s8] sm:$0xff] %v554
    %v556 = vld [vmem:[#allocation2] sm:$0xff]
    %v557 = vld [vmem:[#allocation2 + $0x8] sm:$0xff]
    %v558 = vld [vmem:[#allocation2 + $0x10] sm:$0xff]
    %v559 = vld [vmem:[#allocation2 + $0x18] sm:$0xff]
    %v560 = vld [vmem:[%s4] sm:$0xff]
    %v561 = vld [vmem:[%s4 + $0x8] sm:$0xff]
    %v562 = vld [vmem:[%s4 + $0x10] sm:$0xff]
    %v563 = vld [vmem:[%s4 + $0x18] sm:$0xff]
    %v564 = vld [vmem:[%s4 + $0x20] sm:$0xff]
    %v565 = vld [vmem:[%s4 + $0x28] sm:$0xff]
    %v566 = vld [vmem:[%s4 + $0x30] sm:$0xff]
    %v567 = vld [vmem:[%s4 + $0x38] sm:$0xff]
    %v568 = vld [vmem:[%s4 + $0x40] sm:$0xff]
    %v569 = vld [vmem:[%s4 + $0x48] sm:$0xff]
    %v570 = vld [vmem:[%s4 + $0x50] sm:$0xff]
    %v571 = vld [vmem:[%s4 + $0x58] sm:$0xff]
    %v572 = vld [vmem:[%s4 + $0x60] sm:$0xff]
    %v573 = vld [vmem:[%s4 + $0x68] sm:$0xff]
    %v574 = vld [vmem:[%s4 + $0x70] sm:$0xff]
    %v575 = vld [vmem:[%s4 + $0x78] sm:$0xff]
    %v576 = vld [vmem:[%s5] sm:$0x1]
    %v578 = vlaneseq
    %v579 = vshrl.u32 %v578, 7
    %v580 = vsub.s32 0, %v579
    %v581 = vrot.slane %v576, %v580
    %583 = vmatprep.subr.mxu0 0.0
    %584 = vmatpush1.msra.mxu0 %v560
    %585 = vmatprep.subr.mxu0 0.0
    %586 = vmatpush1.msra.mxu0 %v561
    %587 = vmatprep.subr.mxu0 0.0
    %588 = vmatpush1.msra.mxu0 %v562
    %589 = vmatprep.subr.mxu0 0.0
    %590 = vmatpush1.msra.mxu0 %v563
    %591 = vmatprep.subr.mxu0 0.0
    %592 = vmatpush1.msra.mxu0 %v564
    %593 = vmatprep.subr.mxu0 0.0
    %594 = vmatpush1.msra.mxu0 %v565
    %595 = vmatprep.subr.mxu0 0.0
    %596 = vmatpush1.msra.mxu0 %v566
    %597 = vmatprep.subr.mxu0 0.0
    %598 = vmatpush1.msra.mxu0 %v567
    %599 = vmatprep.subr.mxu0 0.0
    %600 = vmatpush1.msra.mxu0 %v568
    %601 = vmatprep.subr.mxu0 0.0
    %602 = vmatpush1.msra.mxu0 %v569
    %603 = vmatprep.subr.mxu0 0.0
    %604 = vmatpush1.msra.mxu0 %v570
    %605 = vmatprep.subr.mxu0 0.0
    %606 = vmatpush1.msra.mxu0 %v571
    %607 = vmatprep.subr.mxu0 0.0
    %608 = vmatpush1.msra.mxu0 %v572
    %609 = vmatprep.subr.mxu0 0.0
    %610 = vmatpush1.msra.mxu0 %v573
    %611 = vmatprep.subr.mxu0 0.0
    %612 = vmatpush1.msra.mxu0 %v574
    %613 = vmatprep.subr.mxu0 0.0
    %614 = vmatpush1.msra.mxu0 %v575
    %615 = vmatprep.subr.mxu0 0.0
    %616 = vmatpush1.msra.mxu0 0.0
    %617 = vmatprep.subr.mxu0 0.0
    %618 = vmatpush1.msra.mxu0 0.0
    %619 = vmatprep.subr.mxu0 0.0
    %620 = vmatpush1.msra.mxu0 0.0
    %621 = vmatprep.subr.mxu0 0.0
    %622 = vmatpush1.msra.mxu0 0.0
    %623 = vmatprep.subr.mxu0 0.0
    %624 = vmatpush1.msra.mxu0 0.0
    %625 = vmatprep.subr.mxu0 0.0
    %626 = vmatpush1.msra.mxu0 0.0
    %627 = vmatprep.subr.mxu0 0.0
    %628 = vmatpush1.msra.mxu0 0.0
    %629 = vmatprep.subr.mxu0 0.0
    %630 = vmatpush1.msra.mxu0 0.0
    %631 = vmatprep.subr.mxu0 0.0
    %632 = vmatpush1.msra.mxu0 0.0
    %633 = vmatprep.subr.mxu0 0.0
    %634 = vmatpush1.msra.mxu0 0.0
    %635 = vmatprep.subr.mxu0 0.0
    %636 = vmatpush1.msra.mxu0 0.0
    %637 = vmatprep.subr.mxu0 0.0
    %638 = vmatpush1.msra.mxu0 0.0
    %639 = vmatprep.subr.mxu0 0.0
    %640 = vmatpush1.msra.mxu0 0.0
    %641 = vmatprep.subr.mxu0 0.0
    %642 = vmatpush1.msra.mxu0 0.0
    %643 = vmatprep.subr.mxu0 0.0
    %644 = vmatpush1.msra.mxu0 0.0
    %645 = vmatprep.subr.mxu0 0.0
    %646 = vmatpush1.msra.mxu0 0.0
    %647 = vmatprep.mubr.f32.mxu0 0.0
    %648 = vmatmul.mubr.f32.gmra.mrb[0].mxu0 %v556
    %v649 = vpop.f32.mrb[0].mxu0
    %v650 = vadd.f32 %v581, %v649
    %v651 = vpop.f32.mrb[0].mxu0
    %652 = vmatprep.mubr.f32.mxu0 0.0
    %653 = vmatmul.mubr.f32.gmra.mrb[0].mxu0 %v557
    %v654 = vpop.f32.mrb[0].mxu0
    %v655 = vadd.f32 %v581, %v654
    %v656 = vpop.f32.mrb[0].mxu0
    %657 = vmatprep.mubr.f32.mxu0 0.0
    %658 = vmatmul.mubr.f32.gmra.mrb[0].mxu0 %v558
    %v659 = vpop.f32.mrb[0].mxu0
    %v660 = vadd.f32 %v581, %v659
    %v661 = vpop.f32.mrb[0].mxu0
    %662 = vmatprep.mubr.f32.mxu0 0.0
    %663 = vmatmul.mubr.f32.gmra.mrb[0].mxu0 %v559
    %v664 = vpop.f32.mrb[0].mxu0
    %v665 = vadd.f32 %v581, %v664
    %v666 = vpop.f32.mrb[0].mxu0
    %667 = vdwg.mxu0
    %v668 = vmax.f32 %v650, 0.0
    %v669 = vmax.f32 %v655, 0.0
    %v670 = vmax.f32 %v660, 0.0
    %v671 = vmax.f32 %v665, 0.0
    %672 = vst [vmem:[%s6] sm:$0xff] %v668
    %673 = vst [vmem:[%s6 + $0x8] sm:$0xff] %v669
    %674 = vst [vmem:[%s6 + $0x10] sm:$0xff] %v670
    %675 = vst [vmem:[%s6 + $0x18] sm:$0xff] %v671
  $region48: #{_lambda_.1} parent=0 // pred_fallthru
    _
  // Predicated region
  $region49: #{_lambda_.1} parent=0 // pred_check
    _
  $region50: #{_lambda_.1} parent=0 // pred_check_branch
    %677 = sbr.rel (0) target = $region52
  $region51: #{_lambda_.1} parent=0 // pred_region
    _
  $region52: #{_lambda_.1} parent=0 // pred_fallthru
    _
  // Predicated region
  $region53: #{_lambda_.1} parent=0 // pred_check
    _
  $region54: #{_lambda_.1} parent=0 // pred_check_branch
    %679 = sbr.rel (0) target = $region56
  $region55: #{_lambda_.1} parent=0 // pred_region
    _
  $region56: #{_lambda_.1} parent=0 // pred_fallthru
    _
  // Predicated region
  $region57: #{_lambda_.1} parent=0 // pred_check
    _
  $region58: #{_lambda_.1} parent=0 // pred_check_branch
    %681 = sbr.rel (0) target = $region60
  $region59: #{_lambda_.1} parent=0 // pred_region
    _
  $region60: #{_lambda_.1} parent=0 // pred_fallthru
    _
  // Predicated region
  $region61: #{_lambda_.1} parent=0 // pred_check
    _
  $region62: #{_lambda_.1} parent=0 // pred_check_branch
    %683 = sbr.rel (0) target = $region64
  $region63: #{_lambda_.1} parent=0 // pred_region
    _
  $region64: #{_lambda_.1} parent=0 // pred_fallthru
    _
  // Predicated region
  $region65: #{_lambda_.1} parent=0 // pred_check
    _
  $region66: #{_lambda_.1} parent=0 // pred_check_branch
    %685 = sbr.rel (0) target = $region68
  $region67: #{_lambda_.1} parent=0 // pred_region
    _
  $region68: #{_lambda_.1} parent=0 // pred_fallthru
    _
  // Predicated region
  $region69: #{_lambda_.1} parent=0 // pred_check
    _
  $region70: #{_lambda_.1} parent=0 // pred_check_branch
    %687 = sbr.rel (0) target = $region72
  $region71: #{_lambda_.1} parent=0 // pred_region
    _
  $region72: #{_lambda_.1} parent=0 // pred_fallthru
    _

</llo_original>
